<compile_context>
chip_gen: v6e
topology: v6e:2x2x1
jax: 0.10.0
libtpu: 0.0.40
codegen_flags: <defaults>
</compile_context>

<pallas_src>
import jax
import jax.numpy as jnp
from jax.experimental import pallas as pl
from jax.experimental.pallas import tpu as pltpu


# ---------------------------------------------------------------------------
# Small helpers
# ---------------------------------------------------------------------------
def _round_up(x, m):
    return (x + m - 1) // m * m


def _divisors(n):
    out = set()
    i = 1
    while i * i <= n:
        if n % i == 0:
            out.add(i)
            out.add(n // i)
        i += 1
    return sorted(out)


def _tpu_memory_budget():
    """Returns (per-step block budget for in+out, vmem_limit_bytes), derived
    from the chip's physical VMEM.  Double-buffering makes the live footprint
    ~2x the budget, which stays under the limit on every generation:
      v7x  (64 MiB VMEM):  budget 16 MiB, limit 48 MiB
      v6e/v5e (128 MiB):   budget 32 MiB, limit 96 MiB
    """
    try:
        info = pltpu.get_tpu_info()
        vmem_cap = int(getattr(info, "vmem_capacity_bytes", 0)) or (64 << 20)
    except Exception:  # not on TPU hardware / older runtime
        vmem_cap = 64 << 20
    vmem_limit = min(vmem_cap * 3 // 4, 96 << 20)
    budget = min(vmem_cap // 4, 32 << 20)
    return budget, vmem_limit


def _pick_lane_tile(S, per_lane_bytes, budget, min_steps, B):
    """Largest T (multiple of 128 dividing S) whose in+out block fits `budget`,
    then shrunk (never below 128) until the grid has >= min_steps total steps
    so v7x megacore sharding / double-buffering stay engaged at B == 1."""
    U = S // 128
    divs = _divisors(U)
    budget_units = max(1, budget // (per_lane_bytes * 128))
    fit = [d for d in divs if d <= budget_units] or [1]
    idx = len(fit) - 1
    while B * (U // fit[idx]) < min_steps and idx > 0:
        idx -= 1
    return fit[idx] * 128


def _pick_sublane_tile(H, per_unit_bytes, budget, min_steps, B):
    """Same idea for the NCHW fallback: TH multiple of 8 dividing H (or full H).
    per_unit_bytes = padded bytes of 8 rows of (input + output) block."""
    if H % 8 != 0:
        return H
    U = H // 8
    divs = _divisors(U)
    budget_units = max(1, budget // per_unit_bytes)
    fit = [d for d in divs if d <= budget_units] or [1]
    idx = len(fit) - 1
    while B * (U // fit[idx]) < min_steps and idx > 0:
        idx -= 1
    return fit[idx] * 8


# ---------------------------------------------------------------------------
# Kernels
# ---------------------------------------------------------------------------
def _make_flat_kernel(C, extra, H, W, T, sub):
    """Lane-dense path.  Blocks: x (1, C, T), out (1, C+extra, T); T is a
    multiple of 128 (or the full flattened extent S)."""
    C_lo = (C // sub) * sub            # sublane-aligned prefix of x's channels
    w_pow2 = (W & (W - 1)) == 0
    shift = (W - 1).bit_length()

    def kernel(x_ref, o_ref):
        # Bulk pass-through of the aligned channel prefix (unmasked stores).
        if C_lo > 0:
            o_ref[:, :C_lo, :] = x_ref[:, :C_lo, :]

        # Global flattened spatial index for this tile, as one (1, 1, T) slab.
        base = pl.program_id(1) * T
        p = jax.lax.broadcasted_iota(jnp.int32, (1, 1, T), 2) + base

        if w_pow2:
            row = p >> shift
            col = p & (W - 1)
        else:
            # Exact div/mod by W via reciprocal-multiply + one correction step
            # (avoids relying on vectorized integer division lowering).
            q = jnp.floor(p.astype(jnp.float32) * jnp.float32(1.0 / W)).astype(jnp.int32)
            r = p - q * W
            q = jnp.where(r < 0, q - 1, q)
            r = jnp.where(r < 0, r + W, r)
            q = jnp.where(r >= W, q + 1, q)
            r = jnp.where(r >= W, r - W, r)
            row, col = q, r

        # PyTorch-module quirk (valid because H == W is asserted): the channel
        # that varies along W is normalized by (x_dim-1)=(H-1) and vice versa.
        xx = col.astype(jnp.float32) / jnp.float32(H - 1) * 2.0 - 1.0
        yy = row.astype(jnp.float32) / jnp.float32(W - 1) * 2.0 - 1.0
        parts = [xx, yy]
        if extra == 3:
            parts.append(jnp.sqrt(xx * xx + yy * yy))
        coords = jnp.concatenate(parts, axis=1).astype(o_ref.dtype)  # (1, extra, T)

        # Tail store: the unaligned channel remainder of x (if any) fused with
        # the coord channels, so each output sublane tile is written once.
        if C_lo < C:
            tail = jnp.concatenate([x_ref[:, C_lo:, :], coords], axis=1)
        else:
            tail = coords
        o_ref[:, C_lo:, :] = tail

    return kernel


def _make_nchw_kernel(C, extra, H, W, TH, sub):
    """Fallback NCHW path (only used when S = H*W is not 128-aligned AND the
    whole image does not fit a single flat block).  Blocks: (1, C, TH, W)."""
    C_lo = (C // sub) * sub

    def kernel(x_ref, o_ref):
        if C_lo > 0:
            o_ref[:, :C_lo, :, :] = x_ref[:, :C_lo, :, :]

        h0 = pl.program_id(1) * TH
        col = jax.lax.broadcasted_iota(jnp.int32, (1, 1, TH, W), 3)
        row = jax.lax.broadcasted_iota(jnp.int32, (1, 1, TH, W), 2) + h0

        xx = col.astype(jnp.float32) / jnp.float32(H - 1) * 2.0 - 1.0
        yy = row.astype(jnp.float32) / jnp.float32(W - 1) * 2.0 - 1.0
        parts = [xx, yy]
        if extra == 3:
            parts.append(jnp.sqrt(xx * xx + yy * yy))
        coords = jnp.concatenate(parts, axis=1).astype(o_ref.dtype)

        if C_lo < C:
            tail = jnp.concatenate([x_ref[:, C_lo:, :, :], coords], axis=1)
        else:
            tail = coords
        o_ref[:, C_lo:, :, :] = tail

    return kernel


# ---------------------------------------------------------------------------
# Wrapper
# ---------------------------------------------------------------------------
def add_coords(x, with_r=False):
    """Pallas implementation of AddCoords.forward.  x: (B, C, H, W)."""
    B, C, H, W = x.shape
    # The PyTorch module's concatenation only type-checks for square inputs.
    assert H == W, "AddCoords (like the PyTorch module) requires H == W"
    extra = 3 if with_r else 2
    out_C = C + extra
    S = H * W
    ds = jnp.dtype(x.dtype).itemsize
    sub = max(8, 32 // ds)        # sublane packing unit: 8 f32, 16 bf16, 32 i8

    budget, vmem_limit = _tpu_memory_budget()

    cost = pl.CostEstimate(
        flops=6 * B * extra * S,
        transcendentals=(B * S) if with_r else 0,
        bytes_accessed=(B * C * S + B * out_C * S) * ds,
    )
    cparams = pltpu.CompilerParams(
        dimension_semantics=("parallel", "parallel"),
        vmem_limit_bytes=vmem_limit,
    )

    # Padding-aware per-block byte estimate: lane dim rounded to 128, sublane
    # (channel) dim rounded to the dtype packing unit, input + output blocks.
    cpad = _round_up(C, sub)
    opad = _round_up(out_C, sub)
    per_lane_bytes = (cpad + opad) * ds

    flat_tileable = (S % 128 == 0)
    flat_full_bytes = per_lane_bytes * _round_up(S, 128)

    if flat_tileable or flat_full_bytes <= budget:
        # Lane-dense flat path (free reshape to (B, C, S)).
        if flat_tileable:
            T = _pick_lane_tile(S, per_lane_bytes, budget, min_steps=4, B=B)
        else:
            T = S  # small image, single full-extent spatial block
        out = pl.pallas_call(
            _make_flat_kernel(C, extra, H, W, T, sub),
            out_shape=jax.ShapeDtypeStruct((B, out_C, S), x.dtype),
            grid_spec=pltpu.PrefetchScalarGridSpec(
                num_scalar_prefetch=0,
                grid=(B, S // T),
                in_specs=[pl.BlockSpec((1, C, T), lambda b, t: (b, 0, t))],
                out_specs=pl.BlockSpec((1, out_C, T), lambda b, t: (b, 0, t)),
            ),
            compiler_params=cparams,
            cost_estimate=cost,
        )(x.reshape(B, C, S))
        return out.reshape(B, out_C, H, W)

    # Rare fallback (S not 128-aligned and too big for one block): tile over H.
    per_8row_bytes = (C + out_C) * 8 * _round_up(W, 128) * ds
    TH = _pick_sublane_tile(H, per_8row_bytes, budget, min_steps=4, B=B)
    return pl.pallas_call(
        _make_nchw_kernel(C, extra, H, W, TH, sub),
        out_shape=jax.ShapeDtypeStruct((B, out_C, H, W), x.dtype),
        grid_spec=pltpu.PrefetchScalarGridSpec(
            num_scalar_prefetch=0,
            grid=(B, H // TH),
            in_specs=[pl.BlockSpec((1, C, TH, W), lambda b, t: (b, 0, t, 0))],
            out_specs=pl.BlockSpec((1, out_C, TH, W), lambda b, t: (b, 0, t, 0)),
        ),
        compiler_params=cparams,
        cost_estimate=cost,
    )(x)


# ---------------------------------------------------------------------------
# Pure-JAX reference mirroring the PyTorch semantics (square H == W)
# ---------------------------------------------------------------------------
def _reference_add_coords(x, with_r=False):
    B, C, H, W = x.shape  # H = x_dim, W = y_dim
    xx = jnp.broadcast_to(
        jnp.arange(H, dtype=jnp.float32)[None, None, None, :], (B, 1, W, H))
    yy = jnp.broadcast_to(
        jnp.arange(W, dtype=jnp.float32)[None, None, None, :], (B, 1, H, W))
    yy = jnp.transpose(yy, (0, 1, 3, 2))
    xx = (xx / (H - 1) * 2 - 1).astype(x.dtype)
    yy = (yy / (W - 1) * 2 - 1).astype(x.dtype)
    ret = jnp.concatenate([x, xx, yy], axis=1)
    if with_r:
        rr = jnp.sqrt(xx.astype(jnp.float32) ** 2 +
                      yy.astype(jnp.float32) ** 2).astype(x.dtype)
        ret = jnp.concatenate([ret, rr], axis=1)
    return ret


if __name__ == "__main__":
    key = jax.random.PRNGKey(0)

    # Main test shape (multi-tile lane-dense flat path, pow-2 W, C < sublane).
    B, C, H, W = 2, 4, 16, 16
    x = jax.random.normal(key, (B, C, H, W), dtype=jnp.float32)

    out = jax.block_until_ready(add_coords(x, with_r=False))
    ref = _reference_add_coords(x, with_r=False)
    assert out.shape == (B, C + 2, H, W), out.shape
    assert jnp.allclose(out, ref, atol=1e-6), "mismatch vs reference (with_r=False)"

    out_r = jax.block_until_ready(add_coords(x, with_r=True))
    ref_r = _reference_add_coords(x, with_r=True)
    assert out_r.shape == (B, C + 3, H, W), out_r.shape
    assert jnp.allclose(out_r, ref_r, atol=1e-6), "mismatch vs reference (with_r=True)"

    # Non-power-of-two W: exercises the reciprocal-multiply div/mod path.
    x2 = jax.random.normal(jax.random.PRNGKey(1), (1, 3, 24, 24), dtype=jnp.float32)
    out2 = jax.block_until_ready(add_coords(x2, with_r=True))
    ref2 = _reference_add_coords(x2, with_r=True)
    assert out2.shape == (1, 6, 24, 24), out2.shape
    assert jnp.allclose(out2, ref2, atol=1e-6), "mismatch vs reference (W=24)"

    # Sublane-aligned channel count: exercises the unmasked bulk-copy prefix
    # plus coords-only tail store, and the B==1 min-grid-steps adjustment.
    x3 = jax.random.normal(jax.random.PRNGKey(2), (1, 8, 16, 16), dtype=jnp.float32)
    out3 = jax.block_until_ready(add_coords(x3, with_r=False))
    ref3 = _reference_add_coords(x3, with_r=False)
    assert out3.shape == (1, 10, 16, 16), out3.shape
    assert jnp.allclose(out3, ref3, atol=1e-6), "mismatch vs reference (C=8)"

    print("KERNEL_OK")
</pallas_src>

<mosaic_0001>
module attributes {stable_mosaic.version = 11 : i64} {
  func.func @kernel(%arg0: i32, %arg1: i32, %arg2: memref<1x4x128xf32, #tpu.memory_space<vmem>>, %arg3: memref<1x6x128xf32, #tpu.memory_space<vmem>>) attributes {dimension_semantics = [#tpu.dimension_semantics<parallel>, #tpu.dimension_semantics<parallel>], iteration_bounds = array<i64: 2, 2>, scalar_prefetch = 0 : i64, scratch_operands = 0 : i64, tpu.core_type = #tpu.core_type<tc>, window_params = [{transform_indices = @transform_0, window_bounds = array<i64: 1, 4, 128>}, {transform_indices = @transform_1, window_bounds = array<i64: 1, 6, 128>}]} {
    %c128_i32 = arith.constant 128 : i32
    %0 = arith.muli %arg1, %c128_i32 : i32
    %1 = tpu.iota {dimensions = array<i32: 2>} : vector<1x1x128xi32>
    %2 = vector.broadcast %0 : i32 to vector<1x1x128xi32>
    %3 = arith.addi %1, %2 : vector<1x1x128xi32>
    %c4_i32 = arith.constant 4 : i32
    %4 = vector.broadcast %c4_i32 : i32 to vector<1x1x128xi32>
    %5 = arith.shrsi %3, %4 : vector<1x1x128xi32>
    %c15_i32 = arith.constant 15 : i32
    %6 = vector.broadcast %c15_i32 : i32 to vector<1x1x128xi32>
    %7 = arith.andi %3, %6 : vector<1x1x128xi32>
    %8 = arith.sitofp %7 : vector<1x1x128xi32> to vector<1x1x128xf32>
    %cst = arith.constant 1.500000e+01 : f32
    %9 = vector.broadcast %cst : f32 to vector<1x1x128xf32>
    %10 = arith.divf %8, %9 : vector<1x1x128xf32>
    %cst_0 = arith.constant 2.000000e+00 : f32
    %11 = vector.broadcast %cst_0 : f32 to vector<1x1x128xf32>
    %12 = arith.mulf %10, %11 : vector<1x1x128xf32>
    %cst_1 = arith.constant 1.000000e+00 : f32
    %13 = vector.broadcast %cst_1 : f32 to vector<1x1x128xf32>
    %14 = arith.subf %12, %13 : vector<1x1x128xf32>
    %15 = arith.sitofp %5 : vector<1x1x128xi32> to vector<1x1x128xf32>
    %cst_2 = arith.constant 1.500000e+01 : f32
    %16 = vector.broadcast %cst_2 : f32 to vector<1x1x128xf32>
    %17 = arith.divf %15, %16 : vector<1x1x128xf32>
    %cst_3 = arith.constant 2.000000e+00 : f32
    %18 = vector.broadcast %cst_3 : f32 to vector<1x1x128xf32>
    %19 = arith.mulf %17, %18 : vector<1x1x128xf32>
    %cst_4 = arith.constant 1.000000e+00 : f32
    %20 = vector.broadcast %cst_4 : f32 to vector<1x1x128xf32>
    %21 = arith.subf %19, %20 : vector<1x1x128xf32>
    %22 = tpu.concatenate %14, %21 in 1 : vector<1x1x128xf32>, vector<1x1x128xf32> -> vector<1x2x128xf32>
    %c0 = arith.constant 0 : index
    %c0_5 = arith.constant 0 : index
    %c0_6 = arith.constant 0 : index
    %23 = vector.load %arg2[%c0, %c0_5, %c0_6] : memref<1x4x128xf32, #tpu.memory_space<vmem>>, vector<1x4x128xf32>
    %24 = tpu.concatenate %23, %22 in 1 : vector<1x4x128xf32>, vector<1x2x128xf32> -> vector<1x6x128xf32>
    %c0_7 = arith.constant 0 : index
    %c0_8 = arith.constant 0 : index
    %c0_9 = arith.constant 0 : index
    %25 = vector.load %arg3[%c0_7, %c0_8, %c0_9] : memref<1x6x128xf32, #tpu.memory_space<vmem>>, vector<1x6x128xf32>
    tpu.vector_store %arg3[%c0_7, %c0_8, %c0_9], %24 {strides = array<i32>} : memref<1x6x128xf32, #tpu.memory_space<vmem>>, vector<1x6x128xf32>,
    return
  }
  func.func @transform_0(%arg0: i32, %arg1: i32) -> (i32, i32, i32) {
    %c0_i32 = arith.constant 0 : i32
    %c0_i32_0 = arith.constant 0 : i32
    return %arg0, %c0_i32, %arg1 : i32, i32, i32
  }
  func.func @transform_1(%arg0: i32, %arg1: i32) -> (i32, i32, i32) {
    %c0_i32 = arith.constant 0 : i32
    %c0_i32_0 = arith.constant 0 : i32
    return %arg0, %c0_i32, %arg1 : i32, i32, i32
  }
}

</mosaic_0001>

<llo_original>
// kernel: tpu_custom_call.1
$region0: #{tpu_custom_call.1}
  #allocation0 [shape = 'u32[]', space=smem, size = 0x4, offset = 0x4, fixed_abs, tag = 'smem constant byte address 0x4 - core index']
  #allocation1 [shape = 'u32[144,128]{1,0:T(1,128)}', space=vmem, size = 0x12000, scoped, tag = 'internal scratch']
  %s0 = inlined_call_operand.hbm [shape: f32[2,4,256], index: 0, kind: input, shape index: {}]
  %s1 = inlined_call_operand.vmem [shape: f32[2,6,256], index: 1, kind: output, shape index: {}]
  %s2 = sld [smem:[#allocation0]]
  $region41: #{tpu_custom_call.1} parent=0
    _
  %s4 = ssub.s32 1, %s2
  %s5 = scalar_select 0, %s4, %s2
  $region1: #{tpu_custom_call.1} parent=0
    #allocation2 [shape = 'u8[4096]{0}', space=vmem, size = 0x1000, scoped, tag = 'input window, operand 0']
    #allocation3 [shape = 's32[2]{0}', space=sflag, size = 0x8, scoped, tag = 'scoped memory for tpu_custom_call.1']
    %6 = vsyncpa [#allocation3], 0
    %s7 = scalar_lea.sflag [#allocation3], 1
    %8 = vsyncpa %s7, 0
    loop: start=0, step=1, limit=6
    $region2: #{tpu_custom_call.1} parent=1 // loop_pre_header
      _
    $region3: #{tpu_custom_call.1} parent=1 // loop_header
      %s10 = sphi 0, %s14
      %p11 = scmp.ge.s32.totalorder %s10, 6
      %s17 = sphi 0, %s29
      %s18 = sphi 0, %s25
      %s19 = sphi 0, %s17
      %s20 = sphi 0, %s18
      %s21 = sphi 0, %s19
      %s22 = sphi 0, %s20
      %s34 = sphi 0, %s36
      %s37 = sphi 0, %s34
      %s38 = sphi 0, %s37
      %s54 = sphi 0, %s38
      %s62 = sphi 0, %s64
      %s65 = sphi 0, %s62
      %s66 = sphi 0, %s65
      %s82 = sphi 0, %s66
    $region4: #{tpu_custom_call.1} parent=1 // loop_header_branch
      %13 = sbr.rel (%p11) target = $region8
    $region5: #{tpu_custom_call.1} parent=1 // loop_body
      %s15 = ssub.s32 %s10, 1
      %s16 = ssub.s32 %s10, 2
      %s23 = sadd.s32 1, %s18
      %p24 = scmp.ge.s32.totalorder %s23, 2
      %s25 = scalar_select %p24, 0, %s23
      %s26 = sadd.s32 1, %s17
      %s27 = scalar_select %p24, %s26, %s17
      %p28 = scmp.ge.s32.totalorder %s27, 2
      %s29 = scalar_select %p28, 0, %s27
      %s30 = ssub.s32 %s17, %s29
      %s31 = ssub.s32 %s18, %s25
      %s32 = sor.u32 %s30, %s31
      %p33 = scmp.eq.s32.totalorder %s32, 0
      %s35 = sadd.s32 %s34, 1
      %s36 = scalar_select %p33, %s34, %s35
      %p39 = pneg %p33
      %p40 = scmp.eq.s32.totalorder %s10, 3
      %p41 = por %p39, %p40
      %p42 = scmp.ne.s32.totalorder %s34, %s37
      %p43 = scmp.eq.s32.totalorder %s10, 0
      %p44 = por %p42, %p43
      %p45 = scmp.ne.s32.totalorder %s34, %s37
      %p46 = scmp.eq.s32.totalorder %s15, 3
      %p47 = por %p45, %p46
      %p48 = scmp.ne.s32.totalorder %s37, %s38
      %p49 = scmp.eq.s32.totalorder %s15, 0
      %p50 = por %p48, %p49
      %p51 = scmp.ne.s32.totalorder %s37, %s38
      %p52 = scmp.eq.s32.totalorder %s16, 3
      %p53 = por %p51, %p52
      %p55 = scmp.ne.s32.totalorder %s38, %s54
      %p56 = scmp.eq.s32.totalorder %s16, 0
      %p57 = por %p55, %p56
      %s58 = ssub.s32 %s17, %s29
      %s59 = ssub.s32 %s18, %s25
      %s60 = sor.u32 %s58, %s59
      %p61 = scmp.eq.s32.totalorder %s60, 0
      %s63 = sadd.s32 %s62, 1
      %s64 = scalar_select %p61, %s62, %s63
      %p67 = pneg %p61
      %p68 = scmp.eq.s32.totalorder %s10, 3
      %p69 = por %p67, %p68
      %p70 = scmp.ne.s32.totalorder %s62, %s65
      %p71 = scmp.eq.s32.totalorder %s10, 0
      %p72 = por %p70, %p71
      %p73 = scmp.ne.s32.totalorder %s62, %s65
      %p74 = scmp.eq.s32.totalorder %s15, 3
      %p75 = por %p73, %p74
      %p76 = scmp.ne.s32.totalorder %s65, %s66
      %p77 = scmp.eq.s32.totalorder %s15, 0
      %p78 = por %p76, %p77
      %p79 = scmp.ne.s32.totalorder %s65, %s66
      %p80 = scmp.eq.s32.totalorder %s16, 3
      %p81 = por %p79, %p80
      %p83 = scmp.ne.s32.totalorder %s66, %s82
      %p84 = scmp.eq.s32.totalorder %s16, 0
      %p85 = por %p83, %p84
      %p86 = scmp.le.s32.totalorder 1, %s10
      %p87 = scmp.lt.s32.totalorder %s10, 5
      %p88 = pnand %p86, %p87
      %p89 = pneg %p88
      // Predicated region
      $region9: #{tpu_custom_call.1} parent=5 // pred_check
        _
      $region10: #{tpu_custom_call.1} parent=5 // pred_check_branch
        %91 = sbr.rel (%p88) target = $region12
      $region11: #{tpu_custom_call.1} parent=5 // pred_region
        %s92 = ssub.s32 %s10, 1
      $region12: #{tpu_custom_call.1} parent=5 // pred_fallthru
        _
      %p93 = scmp.lt.s32.totalorder %s10, 4
      // Predicated region
      $region13: #{tpu_custom_call.1} parent=5 // pred_check
        %p94 = pneg %p93
      $region14: #{tpu_custom_call.1} parent=5 // pred_check_branch
        %96 = sbr.rel (%p94) target = $region16
      $region15: #{tpu_custom_call.1} parent=5 // pred_region
        // Predicated region
        $region17: #{tpu_custom_call.1} parent=15 // pred_check
          %p97 = pneg %p44
        $region18: #{tpu_custom_call.1} parent=15 // pred_check_branch
          %99 = sbr.rel (%p97) target = $region20
        $region19: #{tpu_custom_call.1} parent=15 // pred_region
          %s100 = sand.u32 %s34, 1
          %s101 = scalar_lea.sflag [#allocation3], %s100
          %s102 = sand.u32 %s34, 1
          %s103 = smul.addr %s102, 4
          %s104 = scalar_lea.vmem [#allocation2], %s103
          %s106 = ssub.s32 64, 64
          %107 = vsyncadd %s101, %s106
          %s108 = smul.addr %s17, 2
          %s109 = sadd.s32 %s18, %s108
          %s110 = smul.addr %s109, 64
          %s111 = scalar_lea.hbm %s0, %s110
          %s113 = sshll.u32 %s104, 4
          %s114 = int_to_ptr.vmem [resolvable:$true] %s113
          %116 = dma.hbm_to_vmem [thread:$0]  %s111, 64, %s114, %s101
        $region20: #{tpu_custom_call.1} parent=15 // pred_fallthru
          _
      $region16: #{tpu_custom_call.1} parent=5 // pred_fallthru
        _
      %p117 = scmp.le.s32.totalorder 1, %s10
      %p118 = scmp.lt.s32.totalorder %s10, 5
      %p119 = pnand %p117, %p118
      %p120 = pneg %p119
      // Predicated region
      $region21: #{tpu_custom_call.1} parent=5 // pred_check
        _
      $region22: #{tpu_custom_call.1} parent=5 // pred_check_branch
        %122 = sbr.rel (%p119) target = $region24
      $region23: #{tpu_custom_call.1} parent=5 // pred_region
        %s123 = ssub.s32 %s10, 1
        %s124 = sand.u32 %s37, 1
        %s125 = scalar_lea.sflag [#allocation3], %s124
        %s126 = sand.u32 %s37, 1
        %s127 = smul.addr %s126, 4
        %s128 = scalar_lea.vmem [#allocation2], %s127
        // Predicated region
        $region25: #{tpu_custom_call.1} parent=23 // pred_check
          %p129 = pneg %p50
        $region26: #{tpu_custom_call.1} parent=23 // pred_check_branch
          %131 = sbr.rel (%p129) target = $region28
        $region27: #{tpu_custom_call.1} parent=23 // pred_region
          %132 = dma.done %s125, 64
        $region28: #{tpu_custom_call.1} parent=23 // pred_fallthru
          _
        %s133 = sand.u32 %s37, 1
        %s134 = scalar_lea.sflag [#allocation3], %s133
        %s135 = sand.u32 %s37, 1
        %s136 = smul.addr %s135, 4
        %s137 = scalar_lea.vmem [#allocation2], %s136
        %p138 = pneg %p50
        %p139 = pneg %p47
        %p140 = pneg %p78
        %p141 = pneg %p75
        %p142 = scmp.lt.s32.totalorder %s19, 1
        %s143 = scalar_select %p142, %s19, 1
        %p144 = scmp.lt.s32.totalorder %s20, 1
        %s145 = scalar_select %p144, %s20, 1
        %s146 = smul.addr %s143, 2
        %s147 = sadd.s32 %s145, %s146
        %s148 = smul.addr %s147, 8
        %s149 = scalar_lea.vmem %s1, %s148
        %p150 = scmp.lt.s32.totalorder %s19, 1
        %s151 = scalar_select %p150, %s19, 1
        %p152 = scmp.lt.s32.totalorder %s20, 1
        %s153 = scalar_select %p152, %s20, 1
        %s154 = smul.addr %s151, 2
        %s155 = sadd.s32 %s153, %s154
        %s156 = smul.addr %s155, 8
        %s157 = scalar_lea.vmem %s1, %s156
        %s158 = smul.u32 %s20, 128
        %v159 = vlaneseq
        %v160 = vand.u32 %v159, 127
        %v161 = vstv %s158
        %v162 = vadd.s32 %v160, %v161
        %v163 = vshra.s32 %v162, 4
        %v164 = vand.u32 %v162, 15
        %v165 = vcvt.s32.f32 %v164
        %v166 = vrcp.pop 15.0
        %v167 = vmul.f32 %v165, %v166
        %v168 = vmul.f32 %v167, 2.0
        %v169 = vsub.f32 %v168, 1.0
        %v170 = vcvt.s32.f32 %v163
        %v171 = vmul.f32 %v170, %v166
        %v172 = vmul.f32 %v171, 2.0
        %v173 = vsub.f32 %v172, 1.0
        %vm174 = vcmask 1040384
        %v175 = vsel %vm174, %v169, %v173
        %v176 = vld [vmem:[%s128] sm:$0xf]
        %v178 = vrot.slane %v175, 4
        %vm180 = vcmask 1043456
        %v181 = vsel %vm180, %v176, %v178
        %182 = vst [vmem:[%s157] sm:$0x3f] %v181
        %p183 = scmp.lt.s32.totalorder %s19, 1
        %s184 = scalar_select %p183, %s19, 1
        %p185 = scmp.lt.s32.totalorder %s20, 1
        %s186 = scalar_select %p185, %s20, 1
        %s187 = smul.addr %s184, 2
        %s188 = sadd.s32 %s186, %s187
        %s189 = smul.addr %s188, 8
        %s190 = scalar_lea.vmem %s1, %s189
        // Predicated region
        $region29: #{tpu_custom_call.1} parent=23 // pred_check
          %p191 = pneg %p75
        $region30: #{tpu_custom_call.1} parent=23 // pred_check_branch
          %193 = sbr.rel (%p191) target = $region32
        $region31: #{tpu_custom_call.1} parent=23 // pred_region
          _
        $region32: #{tpu_custom_call.1} parent=23 // pred_fallthru
          _
      $region24: #{tpu_custom_call.1} parent=5 // pred_fallthru
        _
      %p194 = scmp.le.s32.totalorder 2, %s10
      // Predicated region
      $region33: #{tpu_custom_call.1} parent=5 // pred_check
        %p195 = pneg %p194
      $region34: #{tpu_custom_call.1} parent=5 // pred_check_branch
        %197 = sbr.rel (%p195) target = $region36
      $region35: #{tpu_custom_call.1} parent=5 // pred_region
        %s198 = ssub.s32 %s10, 2
        // Predicated region
        $region37: #{tpu_custom_call.1} parent=35 // pred_check
          %p199 = pneg %p81
        $region38: #{tpu_custom_call.1} parent=35 // pred_check_branch
          %201 = sbr.rel (%p199) target = $region40
        $region39: #{tpu_custom_call.1} parent=35 // pred_region
          %p202 = scmp.lt.s32.totalorder %s21, 1
          %s203 = scalar_select %p202, %s21, 1
          %p204 = scmp.lt.s32.totalorder %s22, 1
          %s205 = scalar_select %p204, %s22, 1
          %s206 = smul.addr %s203, 2
          %s207 = sadd.s32 %s205, %s206
          %s208 = smul.addr %s207, 8
          %s209 = scalar_lea.vmem %s1, %s208
        $region40: #{tpu_custom_call.1} parent=35 // pred_fallthru
          _
      $region36: #{tpu_custom_call.1} parent=5 // pred_fallthru
        _
    $region6: #{tpu_custom_call.1} parent=1 // loop_footer
      %s14 = sadd.s32 1, %s10
    $region7: #{tpu_custom_call.1} parent=1 // loop_footer_branch
      %9 = sbr.rel target = $region3
    $region8: #{tpu_custom_call.1} parent=1 // loop_exit
      _
    %210 = vsyncpa [#allocation3], 1
    %s211 = scalar_lea.sflag [#allocation3], 1
    %212 = vsyncpa %s211, 1

</llo_original>
